<compile_context>
chip_gen: v7x
topology: tpu7x:2x2x1
jax: 0.10.0
libtpu: 0.0.40
codegen_flags: <defaults>
</compile_context>

<pallas_src>
import functools

import jax
import jax.numpy as jnp
from jax.experimental import pallas as pl
from jax.experimental.pallas import tpu as pltpu


def _rbf_kernel(dist_ref, offset_ref, out_ref, *, coeff):
    # dist_ref:   (1, tile_n)        VMEM, nodes lane-dense
    # offset_ref: (num_rbf, 1)       VMEM, rbf on sublanes (resident)
    # out_ref:    (num_rbf, tile_n)  VMEM, lane-dense output block
    d = dist_ref[...]                       # (1, tile_n)
    off = offset_ref[...]                   # (num_rbf, 1)
    diff = d - off                          # broadcast -> (num_rbf, tile_n)
    out_ref[...] = jnp.exp(coeff * diff * diff).astype(out_ref.dtype)


def gaussian_rbf_lane_major(dist, offset, coeff, *, tile_n=2048,
                            out_dtype=jnp.float32):
    """Lane-dense RBF expansion.  Returns phi with shape (num_rbf, num_nodes)."""
    n = dist.shape[0]
    num_rbf = offset.shape[0]
    coeff = float(coeff)  # trace-time constant, folded into the VPU multiply

    # Nodes live on the lane axis -> tiles must be multiples of 128 lanes.
    n128 = ((n + 127) // 128) * 128
    tile_n = max(128, min((tile_n // 128) * 128, n128))
    n_pad = pl.cdiv(n, tile_n) * tile_n

    dist2d = dist.reshape(1, n).astype(jnp.float32)
    if n_pad != n:
        dist2d = jnp.pad(dist2d, ((0, 0), (0, n_pad - n)))
    offset2d = offset.reshape(num_rbf, 1).astype(jnp.float32)

    out = pl.pallas_call(
        functools.partial(_rbf_kernel, coeff=coeff),
        out_shape=jax.ShapeDtypeStruct((num_rbf, n_pad), out_dtype),
        grid_spec=pl.GridSpec(
            grid=(n_pad // tile_n,),
            in_specs=[
                pl.BlockSpec((1, tile_n), lambda i: (0, i)),       # dist tile
                pl.BlockSpec((num_rbf, 1), lambda i: (0, 0)),      # offsets (resident)
            ],
            out_specs=pl.BlockSpec((num_rbf, tile_n), lambda i: (0, i)),
        ),
        compiler_params=pltpu.CompilerParams(
            dimension_semantics=("parallel",)),
    )(dist2d, offset2d)
    return out[:, :n]


def gaussian_rbf(dist, offset, coeff, *, tile_n=2048, out_dtype=jnp.float32):
    """PyTorch-layout output: dist (N,) -> (N, num_rbf).

    Internally computes the lane-dense (num_rbf, N) layout and transposes on
    the wrapper side (layout plumbing; use gaussian_rbf_lane_major to skip it).
    """
    phi = gaussian_rbf_lane_major(dist, offset, coeff,
                                  tile_n=tile_n, out_dtype=out_dtype)
    return phi.T


def make_rbf_params(cutoff_lower=0.0, cutoff_upper=5.0, num_rbf=50):
    offset = jnp.linspace(cutoff_lower, cutoff_upper, num_rbf, dtype=jnp.float32)
    coeff = -0.5 / (offset[1] - offset[0]) ** 2   # host-side; num_rbf >= 2
    return offset, coeff


def reference_rbf(dist, offset, coeff):
    d = dist[:, None] - offset[None, :]
    return jnp.exp(coeff * d * d)


if __name__ == "__main__":
    cutoff_lower, cutoff_upper, num_rbf = 0.0, 5.0, 50
    num_nodes = 64

    offset, coeff = make_rbf_params(cutoff_lower, cutoff_upper, num_rbf)

    key = jax.random.PRNGKey(0)
    dist = jax.random.uniform(key, (num_nodes,), jnp.float32,
                              minval=cutoff_lower, maxval=cutoff_upper)

    out = gaussian_rbf(dist, offset, coeff)
    out = jax.block_until_ready(out)

    ref = reference_rbf(dist, offset, coeff)
    assert out.shape == (num_nodes, num_rbf)
    assert jnp.allclose(out, ref, atol=1e-6, rtol=1e-6), "mismatch vs reference"

    print("KERNEL_OK")
</pallas_src>

<mosaic_0001>
module attributes {stable_mosaic.version = 11 : i64} {
  func.func @_rbf_kernel(%arg0: i32, %arg1: memref<1x128xf32, #tpu.memory_space<vmem>>, %arg2: memref<50x1xf32, #tpu.memory_space<vmem>>, %arg3: memref<50x128xf32, #tpu.memory_space<vmem>>) attributes {dimension_semantics = [#tpu.dimension_semantics<parallel>], iteration_bounds = array<i64: 1>, scalar_prefetch = 0 : i64, scratch_operands = 0 : i64, tpu.core_type = #tpu.core_type<tc>, window_params = [{transform_indices = @transform_0, window_bounds = array<i64: 1, 128>}, {pipeline_mode = #tpu.pipeline_mode<synchronous>, transform_indices = @transform_1, window_bounds = array<i64: 50, 1>}, {transform_indices = @transform_2, window_bounds = array<i64: 50, 128>}]} {
    %c0 = arith.constant 0 : index
    %c0_0 = arith.constant 0 : index
    %0 = vector.load %arg1[%c0, %c0_0] : memref<1x128xf32, #tpu.memory_space<vmem>>, vector<1x128xf32>
    %c0_1 = arith.constant 0 : index
    %c0_2 = arith.constant 0 : index
    %1 = vector.load %arg2[%c0_1, %c0_2] : memref<50x1xf32, #tpu.memory_space<vmem>>, vector<50x1xf32>
    %2 = vector.broadcast %0 : vector<1x128xf32> to vector<50x128xf32>
    %3 = vector.broadcast %1 : vector<50x1xf32> to vector<50x128xf32>
    %4 = arith.subf %2, %3 : vector<50x128xf32>
    %cst = arith.constant -48.0200043 : f32
    %5 = vector.broadcast %cst : f32 to vector<50x128xf32>
    %6 = arith.mulf %5, %4 : vector<50x128xf32>
    %7 = arith.mulf %6, %4 : vector<50x128xf32>
    %8 = math.exp %7 : vector<50x128xf32>
    %c0_3 = arith.constant 0 : index
    %c0_4 = arith.constant 0 : index
    %9 = vector.load %arg3[%c0_3, %c0_4] : memref<50x128xf32, #tpu.memory_space<vmem>>, vector<50x128xf32>
    tpu.vector_store %arg3[%c0_3, %c0_4], %8 {strides = array<i32>} : memref<50x128xf32, #tpu.memory_space<vmem>>, vector<50x128xf32>,
    return
  }
  func.func @transform_0(%arg0: i32) -> (i32, i32) {
    %c0_i32 = arith.constant 0 : i32
    %c0_i32_0 = arith.constant 0 : i32
    return %c0_i32, %arg0 : i32, i32
  }
  func.func @transform_1(%arg0: i32) -> (i32, i32) {
    %c0_i32 = arith.constant 0 : i32
    %c0_i32_0 = arith.constant 0 : i32
    %c0_i32_1 = arith.constant 0 : i32
    return %c0_i32, %c0_i32_0 : i32, i32
  }
  func.func @transform_2(%arg0: i32) -> (i32, i32) {
    %c0_i32 = arith.constant 0 : i32
    %c0_i32_0 = arith.constant 0 : i32
    return %c0_i32, %arg0 : i32, i32
  }
}

</mosaic_0001>

<llo_original>
// kernel: tpu_custom_call.1
$region0: #{tpu_custom_call.1}
  #allocation0 [shape = 'u32[]', space=smem, size = 0x4, offset = 0x4, fixed_abs, tag = 'smem constant byte address 0x4 - core index']
  #allocation1 [shape = 'u32[144,128]{1,0:T(1,128)}', space=vmem, size = 0x12000, scoped, tag = 'internal scratch']
  %s0 = inlined_call_operand.vmem [shape: f32[1,128], index: 0, kind: input, shape index: {}]
  %s1 = inlined_call_operand.vmem [shape: f32[50,1], index: 1, kind: input, shape index: {}]
  %s2 = inlined_call_operand.hbm [shape: f32[50,128], index: 2, kind: output, shape index: {}]
  %s3 = sld [smem:[#allocation0]]
  $region18: #{tpu_custom_call.1} parent=0
    _
  %s5 = ssub.s32 1, %s3
  %s6 = scalar_select 0, %s5, %s3
  $region1: #{tpu_custom_call.1} parent=0
    #allocation2 [shape = 'u8[28672]{0}', space=vmem, size = 0x7000, scoped, tag = 'output window, operand 0, single buffered']
    #allocation3 [shape = 's32[1]{0}', space=sflag, size = 0x4, scoped, tag = 'scoped memory for tpu_custom_call.1']
    %7 = vsyncpa [#allocation3], 0
    // Predicated region
    $region2: #{tpu_custom_call.1} parent=1 // pred_check
      _
    $region3: #{tpu_custom_call.1} parent=1 // pred_check_branch
      %9 = sbr.rel (0) target = $region5
    $region4: #{tpu_custom_call.1} parent=1 // pred_region
      _
    $region5: #{tpu_custom_call.1} parent=1 // pred_fallthru
      _
    // Predicated region
    $region6: #{tpu_custom_call.1} parent=1 // pred_check
      _
    $region7: #{tpu_custom_call.1} parent=1 // pred_check_branch
      %11 = sbr.rel (0) target = $region9
    $region8: #{tpu_custom_call.1} parent=1 // pred_region
      _
    $region9: #{tpu_custom_call.1} parent=1 // pred_fallthru
      _
    %v12 = vld [vmem:[%s0] sm:$0x1]
    %v13 = vld [vmem:[%s1] sm:$0xff]
    %v14 = vld [vmem:[%s1 + $0x8] sm:$0xff]
    %v15 = vld [vmem:[%s1 + $0x10] sm:$0xff]
    %v16 = vld [vmem:[%s1 + $0x18] sm:$0xff]
    %v17 = vld [vmem:[%s1 + $0x20] sm:$0xff]
    %v18 = vld [vmem:[%s1 + $0x28] sm:$0xff]
    %v19 = vld [vmem:[%s1 + $0x30] sm:$0x3]
    %v21 = vlaneseq
    %v22 = vshrl.u32 %v21, 7
    %v23 = vsub.s32 0, %v22
    %v24 = vrot.slane %v12, %v23
    %27 = vset.pattern.permute.xlu0 0
    %28 = vperm.xlu0 %27, %v13
    %v29 = vpop.permute.xlu0 %28
    %32 = vset.pattern.permute.xlu0 0
    %33 = vperm.xlu0 %32, %v14
    %v34 = vpop.permute.xlu0 %33
    %37 = vset.pattern.permute.xlu0 0
    %38 = vperm.xlu0 %37, %v15
    %v39 = vpop.permute.xlu0 %38
    %42 = vset.pattern.permute.xlu0 0
    %43 = vperm.xlu0 %42, %v16
    %v44 = vpop.permute.xlu0 %43
    %47 = vset.pattern.permute.xlu0 0
    %48 = vperm.xlu0 %47, %v17
    %v49 = vpop.permute.xlu0 %48
    %52 = vset.pattern.permute.xlu0 0
    %53 = vperm.xlu0 %52, %v18
    %v54 = vpop.permute.xlu0 %53
    %57 = vset.pattern.permute.xlu0 0
    %58 = vperm.xlu0 %57, %v19
    %v59 = vpop.permute.xlu0 %58
    %v61 = vsub.f32 %v24, %v29
    %v62 = vsub.f32 %v24, %v34
    %v63 = vsub.f32 %v24, %v39
    %v64 = vsub.f32 %v24, %v44
    %v65 = vsub.f32 %v24, %v49
    %v66 = vsub.f32 %v24, %v54
    %v67 = vsub.f32 %v24, %v59
    %v68 = vmul.f32 %v61, -48.020004
    %v69 = vmul.f32 %v62, -48.020004
    %v70 = vmul.f32 %v63, -48.020004
    %v71 = vmul.f32 %v64, -48.020004
    %v72 = vmul.f32 %v65, -48.020004
    %v73 = vmul.f32 %v66, -48.020004
    %v74 = vmul.f32 %v67, -48.020004
    %v75 = vmul.f32 %v68, %v61
    %v76 = vmul.f32 %v69, %v62
    %v77 = vmul.f32 %v70, %v63
    %v78 = vmul.f32 %v71, %v64
    %v79 = vmul.f32 %v72, %v65
    %v80 = vmul.f32 %v73, %v66
    %v81 = vmul.f32 %v74, %v67
    %v82 = vmul.f32 %v75, 1.442695
    %v83 = vpow.pop %v82
    %v84 = vmul.f32 %v76, 1.442695
    %v85 = vpow.pop %v84
    %v86 = vmul.f32 %v77, 1.442695
    %v87 = vpow.pop %v86
    %v88 = vmul.f32 %v78, 1.442695
    %v89 = vpow.pop %v88
    %v90 = vmul.f32 %v79, 1.442695
    %v91 = vpow.pop %v90
    %v92 = vmul.f32 %v80, 1.442695
    %v93 = vpow.pop %v92
    %v94 = vmul.f32 %v81, 1.442695
    %v95 = vpow.pop %v94
    %96 = vst [vmem:[#allocation2] sm:$0xff] %v83
    %97 = vst [vmem:[#allocation2 + $0x8] sm:$0xff] %v85
    %98 = vst [vmem:[#allocation2 + $0x10] sm:$0xff] %v87
    %99 = vst [vmem:[#allocation2 + $0x18] sm:$0xff] %v89
    %100 = vst [vmem:[#allocation2 + $0x20] sm:$0xff] %v91
    %101 = vst [vmem:[#allocation2 + $0x28] sm:$0xff] %v93
    %102 = vst [vmem:[#allocation2 + $0x30] sm:$0x3] %v95
    // Predicated region
    $region10: #{tpu_custom_call.1} parent=1 // pred_check
      _
    $region11: #{tpu_custom_call.1} parent=1 // pred_check_branch
      %104 = sbr.rel (0) target = $region13
    $region12: #{tpu_custom_call.1} parent=1 // pred_region
      %s106 = ssub.s32 896, 896
      %107 = vsyncadd [#allocation3], %s106
      %s108 = sshll.u32 [#allocation2], 4
      %s109 = int_to_ptr.vmem [resolvable:$true] %s108
      %114 = dma.vmem_to_hbm [thread:$0]  %s109, 896, %s2, [#allocation3], 128, 128, 8
    $region13: #{tpu_custom_call.1} parent=1 // pred_fallthru
      _
    // Predicated region
    $region14: #{tpu_custom_call.1} parent=1 // pred_check
      _
    $region15: #{tpu_custom_call.1} parent=1 // pred_check_branch
      %116 = sbr.rel (0) target = $region17
    $region16: #{tpu_custom_call.1} parent=1 // pred_region
      %117 = dma.done [#allocation3], 896
    $region17: #{tpu_custom_call.1} parent=1 // pred_fallthru
      _
    %118 = vsyncpa [#allocation3], 1

</llo_original>
